<compile_context>
chip_gen: v7x
topology: tpu7x:2x2x1
jax: 0.10.0
libtpu: 0.0.40
codegen_flags: <defaults>
</compile_context>

<pallas_src>
import numpy as np
import jax
import jax.numpy as jnp
from jax.experimental import pallas as pl
from jax.experimental.pallas import tpu as pltpu


def _round_up(n, m):
    return ((n + m - 1) // m) * m


def _qnet_kernel(xa_ref, w1_ref, b1_ref, w2_ref, b2_ref, w3_ref, b3_ref, o_ref):
    # fc1: single matmul over the concatenated [obs || act] features.
    # Activations are cast to the weight storage dtype (bf16 at rest by
    # default); accumulation is f32 and the bias+ReLU epilogues stay f32.
    w1 = w1_ref[...]
    h1 = jnp.dot(xa_ref[...].astype(w1.dtype), w1,
                 preferred_element_type=jnp.float32)
    h1 = jnp.maximum(h1 + b1_ref[...], 0.0)               # (TB, 256) f32

    # fc2 + ReLU (dominant matmul; W2 resident in VMEM, no per-step cast).
    w2 = w2_ref[...]
    h2 = jnp.dot(h1.astype(w2.dtype), w2,
                 preferred_element_type=jnp.float32)
    h2 = jnp.maximum(h2 + b2_ref[...], 0.0)               # (TB, 256) f32

    # fc3: single output column -> VPU multiply + XLU lane reduction instead
    # of pushing a (256,1) matmul through the MXU.  b3 is a scalar in SMEM.
    out = jnp.sum(h2 * w3_ref[...], axis=-1, keepdims=True) + b3_ref[0]
    o_ref[...] = out.astype(o_ref.dtype)                  # (TB, 1)


def qnetwork_forward(x, a, params, *, block_b=256, min_grid_steps=2):
    """x: (B, ...) obs, a: (B, act_dim) -> (B, 1) float32 Q values.

    block_b: batch tile (256 fills the v6e/v7x MXU; use 128 on v5e).
    min_grid_steps: keep >= 2 grid steps when the batch allows so the
    "parallel" batch axis is shared by both TensorCores on v7x.
    """
    B = x.shape[0]
    x_flat = x.reshape(B, -1).astype(jnp.float32)          # matches x.view(B,-1)
    a = a.astype(jnp.float32)
    xa = jnp.concatenate([x_flat, a], axis=1)              # tiny (B, d_in) concat
    d_in = xa.shape[1]

    w1, b1, w2, b2, w3, b3 = params
    H = w2.shape[0]

    # Batch tile: multiple of 8 sublanes; weights are resident across steps.
    tb = min(block_b, _round_up(B, 8))
    if B > 8 and min_grid_steps > 1:
        tb = min(tb, _round_up(pl.cdiv(B, min_grid_steps), 8))
    grid = (pl.cdiv(B, tb),)

    out = pl.pallas_call(
        _qnet_kernel,
        out_shape=jax.ShapeDtypeStruct((B, 1), jnp.float32),
        grid=grid,
        in_specs=[
            pl.BlockSpec((tb, d_in), lambda i: (i, 0)),    # [x||a] tile
            pl.BlockSpec((d_in, H), lambda i: (0, 0)),     # W1 (resident, bf16)
            pl.BlockSpec((1, H), lambda i: (0, 0)),        # b1 (f32)
            pl.BlockSpec((H, H), lambda i: (0, 0)),        # W2 (resident, bf16)
            pl.BlockSpec((1, H), lambda i: (0, 0)),        # b2 (f32)
            pl.BlockSpec((1, H), lambda i: (0, 0)),        # W3 row (f32)
            pl.BlockSpec(memory_space=pltpu.SMEM),         # b3 scalar
        ],
        out_specs=pl.BlockSpec((tb, 1), lambda i: (i, 0)),
        compiler_params=pltpu.CompilerParams(
            dimension_semantics=("parallel",)),            # v7x: 2 TCs share batch
    )(xa, w1, b1, w2, b2, w3, b3)
    return out


def init_qnetwork_params(key, obs_dim, act_dim, hidden=256,
                         weight_dtype=jnp.bfloat16):
    """PyTorch-style init U(-1/sqrt(fan_in), 1/sqrt(fan_in)).

    W1/W2 are stored pre-transposed (in, out) and, by default, bf16 at rest;
    biases and the fc3 row stay f32 (epilogue dtype).  b3 is a (1,) scalar
    passed through SMEM.
    """
    d_in = obs_dim + act_dim
    keys = jax.random.split(key, 6)

    def u(k, shape, fan_in, dtype=jnp.float32):
        bound = 1.0 / np.sqrt(fan_in)
        return jax.random.uniform(k, shape, jnp.float32, -bound, bound).astype(dtype)

    w1 = u(keys[0], (d_in, hidden), d_in, weight_dtype)
    b1 = u(keys[1], (1, hidden), d_in)
    w2 = u(keys[2], (hidden, hidden), hidden, weight_dtype)
    b2 = u(keys[3], (1, hidden), hidden)
    w3 = u(keys[4], (1, hidden), hidden)           # row layout for VPU fc3
    b3 = u(keys[5], (1,), hidden)                  # scalar via SMEM
    return (w1, b1, w2, b2, w3, b3)


def qnetwork_reference(x, a, params):
    """Pure-JAX reference (same math as the PyTorch module), f32 throughout."""
    w1, b1, w2, b2, w3, b3 = params
    xa = jnp.concatenate([x.reshape(x.shape[0], -1), a], axis=1)
    h1 = jnp.maximum(xa @ w1.astype(jnp.float32) + b1, 0.0)
    h2 = jnp.maximum(h1 @ w2.astype(jnp.float32) + b2, 0.0)
    return h2 @ w3.T + b3


if __name__ == "__main__":
    # Env-like shapes: obs_dim=17, act_dim=6 (e.g. HalfCheetah).
    OBS_DIM, ACT_DIM = 17, 6

    key = jax.random.PRNGKey(0)
    k_params, k_x1, k_a1, k_x2, k_a2 = jax.random.split(key, 5)

    # --- Test 1: tiny batch, exact float32 weights (single grid step) ---
    params_f32 = init_qnetwork_params(k_params, OBS_DIM, ACT_DIM,
                                      weight_dtype=jnp.float32)
    B1 = 8
    x1 = jax.random.normal(k_x1, (B1, OBS_DIM), dtype=jnp.float32)
    a1 = jax.random.uniform(k_a1, (B1, ACT_DIM), dtype=jnp.float32,
                            minval=-1.0, maxval=1.0)
    out1 = jax.block_until_ready(qnetwork_forward(x1, a1, params_f32))
    ref1 = qnetwork_reference(x1, a1, params_f32)
    assert out1.shape == (B1, 1), out1.shape
    np.testing.assert_allclose(np.asarray(out1), np.asarray(ref1),
                               rtol=1e-5, atol=1e-5)

    # --- Test 2: training-sized batch, bf16 weights at rest, batch grid with
    #             >= 2 steps and a partial last tile; f32 accumulate/epilogue. ---
    params_bf16 = init_qnetwork_params(k_params, OBS_DIM, ACT_DIM,
                                       weight_dtype=jnp.bfloat16)
    B2 = 200
    x2 = jax.random.normal(k_x2, (B2, OBS_DIM), dtype=jnp.float32)
    a2 = jax.random.uniform(k_a2, (B2, ACT_DIM), dtype=jnp.float32,
                            minval=-1.0, maxval=1.0)
    out2 = jax.block_until_ready(
        qnetwork_forward(x2, a2, params_bf16, block_b=256))
    ref2 = qnetwork_reference(x2, a2, params_bf16)
    assert out2.shape == (B2, 1), out2.shape
    np.testing.assert_allclose(np.asarray(out2), np.asarray(ref2),
                               rtol=2e-2, atol=2e-2)

    print("KERNEL_OK")
</pallas_src>

<mosaic_0001>
module attributes {stable_mosaic.version = 11 : i64} {
  func.func @_qnet_kernel(%arg0: i32, %arg1: memref<8x23xf32, #tpu.memory_space<vmem>>, %arg2: memref<23x256xf32, #tpu.memory_space<vmem>>, %arg3: memref<1x256xf32, #tpu.memory_space<vmem>>, %arg4: memref<256x256xf32, #tpu.memory_space<vmem>>, %arg5: memref<1x256xf32, #tpu.memory_space<vmem>>, %arg6: memref<1x256xf32, #tpu.memory_space<vmem>>, %arg7: memref<1xf32, #tpu.memory_space<smem>>, %arg8: memref<8x1xf32, #tpu.memory_space<vmem>>) attributes {dimension_semantics = [#tpu.dimension_semantics<parallel>], iteration_bounds = array<i64: 1>, scalar_prefetch = 0 : i64, scratch_operands = 0 : i64, tpu.core_type = #tpu.core_type<tc>, window_params = [{transform_indices = @transform_0, window_bounds = array<i64: 8, 23>}, {pipeline_mode = #tpu.pipeline_mode<synchronous>, transform_indices = @transform_1, window_bounds = array<i64: 23, 256>}, {pipeline_mode = #tpu.pipeline_mode<synchronous>, transform_indices = @transform_2, window_bounds = array<i64: 1, 256>}, {pipeline_mode = #tpu.pipeline_mode<synchronous>, transform_indices = @transform_3, window_bounds = array<i64: 256, 256>}, {pipeline_mode = #tpu.pipeline_mode<synchronous>, transform_indices = @transform_4, window_bounds = array<i64: 1, 256>}, {pipeline_mode = #tpu.pipeline_mode<synchronous>, transform_indices = @transform_5, window_bounds = array<i64: 1, 256>}, {transform_indices = @transform_6, window_bounds = array<i64: 1>}, {transform_indices = @transform_7, window_bounds = array<i64: 8, 1>}]} {
    %c0 = arith.constant 0 : index
    %c0_0 = arith.constant 0 : index
    %0 = vector.load %arg2[%c0, %c0_0] : memref<23x256xf32, #tpu.memory_space<vmem>>, vector<23x256xf32>
    %c0_1 = arith.constant 0 : index
    %c0_2 = arith.constant 0 : index
    %1 = vector.load %arg1[%c0_1, %c0_2] : memref<8x23xf32, #tpu.memory_space<vmem>>, vector<8x23xf32>
    %cst = arith.constant dense<0.000000e+00> : vector<8x256xf32>
    %2 = tpu.matmul %1, %0, %cst {dimension_numbers = #tpu.dot_dimension_numbers<[1], [0], [0], [1], [0, 0, 1, 1], [], []>} : vector<8x23xf32>, vector<23x256xf32>, vector<8x256xf32> -> vector<8x256xf32>
    %c0_3 = arith.constant 0 : index
    %c0_4 = arith.constant 0 : index
    %3 = vector.load %arg3[%c0_3, %c0_4] : memref<1x256xf32, #tpu.memory_space<vmem>>, vector<1x256xf32>
    %4 = vector.broadcast %3 : vector<1x256xf32> to vector<8x256xf32>
    %5 = arith.addf %2, %4 : vector<8x256xf32>
    %cst_5 = arith.constant 0.000000e+00 : f32
    %6 = vector.broadcast %cst_5 : f32 to vector<8x256xf32>
    %7 = arith.maximumf %5, %6 : vector<8x256xf32>
    %c0_6 = arith.constant 0 : index
    %c0_7 = arith.constant 0 : index
    %8 = vector.load %arg4[%c0_6, %c0_7] : memref<256x256xf32, #tpu.memory_space<vmem>>, vector<256x256xf32>
    %cst_8 = arith.constant dense<0.000000e+00> : vector<8x256xf32>
    %9 = tpu.matmul %7, %8, %cst_8 {dimension_numbers = #tpu.dot_dimension_numbers<[1], [0], [0], [1], [0, 0, 1, 1], [], []>} : vector<8x256xf32>, vector<256x256xf32>, vector<8x256xf32> -> vector<8x256xf32>
    %c0_9 = arith.constant 0 : index
    %c0_10 = arith.constant 0 : index
    %10 = vector.load %arg5[%c0_9, %c0_10] : memref<1x256xf32, #tpu.memory_space<vmem>>, vector<1x256xf32>
    %11 = vector.broadcast %10 : vector<1x256xf32> to vector<8x256xf32>
    %12 = arith.addf %9, %11 : vector<8x256xf32>
    %cst_11 = arith.constant 0.000000e+00 : f32
    %13 = vector.broadcast %cst_11 : f32 to vector<8x256xf32>
    %14 = arith.maximumf %12, %13 : vector<8x256xf32>
    %c0_12 = arith.constant 0 : index
    %c0_13 = arith.constant 0 : index
    %15 = vector.load %arg6[%c0_12, %c0_13] : memref<1x256xf32, #tpu.memory_space<vmem>>, vector<1x256xf32>
    %16 = vector.broadcast %15 : vector<1x256xf32> to vector<8x256xf32>
    %17 = arith.mulf %14, %16 : vector<8x256xf32>
    %cst_14 = arith.constant dense<0.000000e+00> : vector<8xf32>
    %18 = vector.multi_reduction <add>, %17, %cst_14 [1] : vector<8x256xf32> to vector<8xf32>
    %19 = vector.shape_cast %18 : vector<8xf32> to vector<8x1xf32>
    %c0_15 = arith.constant 0 : index
    %20 = memref.load %arg7[%c0_15] : memref<1xf32, #tpu.memory_space<smem>>
    %21 = vector.broadcast %20 : f32 to vector<8x1xf32>
    %22 = arith.addf %19, %21 : vector<8x1xf32>
    %c0_16 = arith.constant 0 : index
    %c0_17 = arith.constant 0 : index
    %23 = vector.load %arg8[%c0_16, %c0_17] : memref<8x1xf32, #tpu.memory_space<vmem>>, vector<8x1xf32>
    tpu.vector_store %arg8[%c0_16, %c0_17], %22 {strides = array<i32>} : memref<8x1xf32, #tpu.memory_space<vmem>>, vector<8x1xf32>,
    return
  }
  func.func @transform_0(%arg0: i32) -> (i32, i32) {
    %c0_i32 = arith.constant 0 : i32
    %c0_i32_0 = arith.constant 0 : i32
    return %arg0, %c0_i32 : i32, i32
  }
  func.func @transform_1(%arg0: i32) -> (i32, i32) {
    %c0_i32 = arith.constant 0 : i32
    %c0_i32_0 = arith.constant 0 : i32
    %c0_i32_1 = arith.constant 0 : i32
    return %c0_i32, %c0_i32_0 : i32, i32
  }
  func.func @transform_2(%arg0: i32) -> (i32, i32) {
    %c0_i32 = arith.constant 0 : i32
    %c0_i32_0 = arith.constant 0 : i32
    %c0_i32_1 = arith.constant 0 : i32
    return %c0_i32, %c0_i32_0 : i32, i32
  }
  func.func @transform_3(%arg0: i32) -> (i32, i32) {
    %c0_i32 = arith.constant 0 : i32
    %c0_i32_0 = arith.constant 0 : i32
    %c0_i32_1 = arith.constant 0 : i32
    return %c0_i32, %c0_i32_0 : i32, i32
  }
  func.func @transform_4(%arg0: i32) -> (i32, i32) {
    %c0_i32 = arith.constant 0 : i32
    %c0_i32_0 = arith.constant 0 : i32
    %c0_i32_1 = arith.constant 0 : i32
    return %c0_i32, %c0_i32_0 : i32, i32
  }
  func.func @transform_5(%arg0: i32) -> (i32, i32) {
    %c0_i32 = arith.constant 0 : i32
    %c0_i32_0 = arith.constant 0 : i32
    %c0_i32_1 = arith.constant 0 : i32
    return %c0_i32, %c0_i32_0 : i32, i32
  }
  func.func @transform_6(%arg0: i32) -> i32 {
    %c0_i32 = arith.constant 0 : i32
    %c0_i32_0 = arith.constant 0 : i32
    return %c0_i32 : i32
  }
  func.func @transform_7(%arg0: i32) -> (i32, i32) {
    %c0_i32 = arith.constant 0 : i32
    %c0_i32_0 = arith.constant 0 : i32
    return %arg0, %c0_i32 : i32, i32
  }
}

</mosaic_0001>

<llo_original>
// kernel: tpu_custom_call.1
$region0: #{tpu_custom_call.1}
  #allocation0 [shape = 'u32[]', space=smem, size = 0x4, offset = 0x4, fixed_abs, tag = 'smem constant byte address 0x4 - core index']
  #allocation1 [shape = 'u32[144,128]{1,0:T(1,128)}', space=vmem, size = 0x12000, scoped, tag = 'internal scratch']
  #allocation2 [shape = 'f32[1]{0:T(128)S(6)}', space=smem, size = 0x200, scoped, tag = 'scoped memory for tpu_custom_call.1']
  %s0 = inlined_call_operand.hbm [shape: f32[8,23], index: 0, kind: input, shape index: {}]
  %s1 = inlined_call_operand.hbm [shape: f32[23,256], index: 1, kind: input, shape index: {}]
  %s2 = inlined_call_operand.vmem [shape: f32[1,256], index: 2, kind: input, shape index: {}]
  %s3 = inlined_call_operand.hbm [shape: f32[256,256], index: 3, kind: input, shape index: {}]
  %s4 = inlined_call_operand.vmem [shape: f32[1,256], index: 4, kind: input, shape index: {}]
  %s5 = inlined_call_operand.vmem [shape: f32[1,256], index: 5, kind: input, shape index: {}]
  %s6 = inlined_call_operand.<no memory space> [shape: f32[1], index: 6, kind: input, shape index: {}]
  %s7 = inlined_call_operand.vmem [shape: f32[8,1], index: 7, kind: output, shape index: {}]
  %s8 = sld [smem:[#allocation0]]
  $region50: #{tpu_custom_call.1} parent=0
    _
  %s10 = ssub.s32 1, %s8
  %s11 = scalar_select 0, %s10, %s8
  %12 = sst [smem:[#allocation2]] %s6
  $region1: #{tpu_custom_call.1} parent=0
    #allocation3 [shape = 'u8[4096]{0}', space=vmem, size = 0x1000, scoped, tag = 'input window, operand 0, single buffered']
    #allocation4 [shape = 's32[1]{0}', space=sflag, size = 0x4, scoped, tag = 'scoped memory for tpu_custom_call.1']
    #allocation5 [shape = 'u8[24576]{0}', space=vmem, size = 0x6000, scoped, tag = 'input window, operand 1, single buffered']
    #allocation6 [shape = 's32[1]{0}', space=sflag, size = 0x4, scoped, tag = 'scoped memory for tpu_custom_call.1']
    #allocation7 [shape = 'u8[262144]{0}', space=vmem, size = 0x40000, scoped, tag = 'input window, operand 3, single buffered']
    %13 = vsyncpa [#allocation4], 0
    %14 = vsyncpa [#allocation6], 0
    // Predicated region
    $region2: #{tpu_custom_call.1} parent=1 // pred_check
      _
    $region3: #{tpu_custom_call.1} parent=1 // pred_check_branch
      %16 = sbr.rel (0) target = $region5
    $region4: #{tpu_custom_call.1} parent=1 // pred_region
      %s18 = ssub.s32 128, 128
      %19 = vsyncadd [#allocation4], %s18
      %s21 = sshll.u32 [#allocation3], 4
      %s22 = int_to_ptr.vmem [resolvable:$true] %s21
      %24 = dma.hbm_to_vmem [thread:$0]  %s0, 128, %s22, [#allocation4]
    $region5: #{tpu_custom_call.1} parent=1 // pred_fallthru
      _
    // Predicated region
    $region6: #{tpu_custom_call.1} parent=1 // pred_check
      _
    $region7: #{tpu_custom_call.1} parent=1 // pred_check_branch
      %26 = sbr.rel (0) target = $region9
    $region8: #{tpu_custom_call.1} parent=1 // pred_region
      %s28 = ssub.s32 768, 768
      %29 = vsyncadd [#allocation6], %s28
      %s30 = sshll.u32 [#allocation5], 4
      %s31 = int_to_ptr.vmem [resolvable:$true] %s30
      %36 = dma.hbm_to_vmem [thread:$0]  %s1, 768, %s31, [#allocation6], 256, 256, 16
    $region9: #{tpu_custom_call.1} parent=1 // pred_fallthru
      _
    // Predicated region
    $region10: #{tpu_custom_call.1} parent=1 // pred_check
      _
    $region11: #{tpu_custom_call.1} parent=1 // pred_check_branch
      %38 = sbr.rel (0) target = $region13
    $region12: #{tpu_custom_call.1} parent=1 // pred_region
      _
    $region13: #{tpu_custom_call.1} parent=1 // pred_fallthru
      _
    // Predicated region
    $region14: #{tpu_custom_call.1} parent=1 // pred_check
      _
    $region15: #{tpu_custom_call.1} parent=1 // pred_check_branch
      %40 = sbr.rel (0) target = $region17
    $region16: #{tpu_custom_call.1} parent=1 // pred_region
      %s42 = ssub.s32 8192, 8192
      %43 = vsyncadd [#allocation6], %s42
      %s44 = sshll.u32 [#allocation7], 4
      %s45 = int_to_ptr.vmem [resolvable:$true] %s44
      %50 = dma.hbm_to_vmem [thread:$0]  %s3, 8192, %s45, [#allocation6], 256, 256, 16
    $region17: #{tpu_custom_call.1} parent=1 // pred_fallthru
      _
    // Predicated region
    $region18: #{tpu_custom_call.1} parent=1 // pred_check
      _
    $region19: #{tpu_custom_call.1} parent=1 // pred_check_branch
      %52 = sbr.rel (0) target = $region21
    $region20: #{tpu_custom_call.1} parent=1 // pred_region
      _
    $region21: #{tpu_custom_call.1} parent=1 // pred_fallthru
      _
    // Predicated region
    $region22: #{tpu_custom_call.1} parent=1 // pred_check
      _
    $region23: #{tpu_custom_call.1} parent=1 // pred_check_branch
      %54 = sbr.rel (0) target = $region25
    $region24: #{tpu_custom_call.1} parent=1 // pred_region
      _
    $region25: #{tpu_custom_call.1} parent=1 // pred_fallthru
      _
    // Predicated region
    $region26: #{tpu_custom_call.1} parent=1 // pred_check
      _
    $region27: #{tpu_custom_call.1} parent=1 // pred_check_branch
      %56 = sbr.rel (0) target = $region29
    $region28: #{tpu_custom_call.1} parent=1 // pred_region
      _
    $region29: #{tpu_custom_call.1} parent=1 // pred_fallthru
      _
    // Predicated region
    $region30: #{tpu_custom_call.1} parent=1 // pred_check
      _
    $region31: #{tpu_custom_call.1} parent=1 // pred_check_branch
      %58 = sbr.rel (0) target = $region33
    $region32: #{tpu_custom_call.1} parent=1 // pred_region
      %59 = dma.done [#allocation4], 128
    $region33: #{tpu_custom_call.1} parent=1 // pred_fallthru
      _
    // Predicated region
    $region34: #{tpu_custom_call.1} parent=1 // pred_check
      _
    $region35: #{tpu_custom_call.1} parent=1 // pred_check_branch
      %61 = sbr.rel (0) target = $region37
    $region36: #{tpu_custom_call.1} parent=1 // pred_region
      %62 = dma.done [#allocation6], 768
    $region37: #{tpu_custom_call.1} parent=1 // pred_fallthru
      _
    // Predicated region
    $region38: #{tpu_custom_call.1} parent=1 // pred_check
      _
    $region39: #{tpu_custom_call.1} parent=1 // pred_check_branch
      %64 = sbr.rel (0) target = $region41
    $region40: #{tpu_custom_call.1} parent=1 // pred_region
      %65 = dma.done [#allocation6], 8192
    $region41: #{tpu_custom_call.1} parent=1 // pred_fallthru
      _
    %v66 = vld [vmem:[#allocation5] sm:$0xff]
    %v67 = vld [vmem:[#allocation5 + $0x8] sm:$0xff]
    %v68 = vld [vmem:[#allocation5 + $0x10] sm:$0xff]
    %v69 = vld [vmem:[#allocation5 + $0x18] sm:$0xff]
    %v70 = vld [vmem:[#allocation5 + $0x20] sm:$0x7f]
    %v71 = vld [vmem:[#allocation5 + $0x28] sm:$0x7f]
    %v72 = vld [vmem:[#allocation3] sm:$0xff]
    %v73 = vld [vmem:[%s2] sm:$0x3]
    %v75 = vlaneseq
    %v76 = vshrl.u32 %v75, 7
    %v77 = vsub.s32 0, %v76
    %v78 = vrot.slane %v73, %v77
    %v79 = vlaneseq
    %v80 = vshrl.u32 %v79, 7
    %v81 = vsub.s32 1, %v80
    %v82 = vrot.slane %v73, %v81
    %vm85 = vcmask 187392
    %v87 = vsel %vm85, %v72, 0
    %vm89 = vcmask 1046528
    %v91 = vsel %vm89, %v70, 0
    %v94 = vsel %vm89, %v71, 0
    %96 = vmatprep.subr.mxu0 %v67
    %97 = vmatpush1.msra.mxu0 %v66
    %98 = vmatprep.subr.mxu0 %v69
    %99 = vmatpush1.msra.mxu0 %v68
    %100 = vmatprep.subr.mxu0 %v94
    %101 = vmatpush1.msra.mxu0 %v91
    %102 = vmatprep.subr.mxu0 0.0
    %103 = vmatpush1.msra.mxu0 0.0
    %104 = vmatprep.subr.mxu0 0.0
    %105 = vmatpush1.msra.mxu0 0.0
    %106 = vmatprep.subr.mxu0 0.0
    %107 = vmatpush1.msra.mxu0 0.0
    %108 = vmatprep.subr.mxu0 0.0
    %109 = vmatpush1.msra.mxu0 0.0
    %110 = vmatprep.subr.mxu0 0.0
    %111 = vmatpush1.msra.mxu0 0.0
    %112 = vmatprep.subr.mxu0 0.0
    %113 = vmatpush1.msra.mxu0 0.0
    %114 = vmatprep.subr.mxu0 0.0
    %115 = vmatpush1.msra.mxu0 0.0
    %116 = vmatprep.subr.mxu0 0.0
    %117 = vmatpush1.msra.mxu0 0.0
    %118 = vmatprep.subr.mxu0 0.0
    %119 = vmatpush1.msra.mxu0 0.0
    %120 = vmatprep.subr.mxu0 0.0
    %121 = vmatpush1.msra.mxu0 0.0
    %122 = vmatprep.subr.mxu0 0.0
    %123 = vmatpush1.msra.mxu0 0.0
    %124 = vmatprep.subr.mxu0 0.0
    %125 = vmatpush1.msra.mxu0 0.0
    %126 = vmatprep.subr.mxu0 0.0
    %127 = vmatpush1.msra.mxu0 0.0
    %128 = vmatprep.subr.mxu0 0.0
    %129 = vmatpush1.msra.mxu0 0.0
    %130 = vmatprep.subr.mxu0 0.0
    %131 = vmatpush1.msra.mxu0 0.0
    %132 = vmatprep.subr.mxu0 0.0
    %133 = vmatpush1.msra.mxu0 0.0
    %134 = vmatprep.subr.mxu0 0.0
    %135 = vmatpush1.msra.mxu0 0.0
    %136 = vmatprep.subr.mxu0 0.0
    %137 = vmatpush1.msra.mxu0 0.0
    %138 = vmatprep.subr.mxu0 0.0
    %139 = vmatpush1.msra.mxu0 0.0
    %140 = vmatprep.subr.mxu0 0.0
    %141 = vmatpush1.msra.mxu0 0.0
    %142 = vmatprep.subr.mxu0 0.0
    %143 = vmatpush1.msra.mxu0 0.0
    %144 = vmatprep.subr.mxu0 0.0
    %145 = vmatpush1.msra.mxu0 0.0
    %146 = vmatprep.subr.mxu0 0.0
    %147 = vmatpush1.msra.mxu0 0.0
    %148 = vmatprep.subr.mxu0 0.0
    %149 = vmatpush1.msra.mxu0 0.0
    %150 = vmatprep.subr.mxu0 0.0
    %151 = vmatpush1.msra.mxu0 0.0
    %152 = vmatprep.subr.mxu0 0.0
    %153 = vmatpush1.msra.mxu0 0.0
    %154 = vmatprep.subr.mxu0 0.0
    %155 = vmatpush1.msra.mxu0 0.0
    %156 = vmatprep.subr.mxu0 0.0
    %157 = vmatpush1.msra.mxu0 0.0
    %158 = vmatprep.subr.mxu0 0.0
    %159 = vmatpush1.msra.mxu0 0.0
    %160 = vmatprep.mubr.f32.mxu0 0.0
    %161 = vmatmul.mubr.f32.gmra.mrb[0].mxu0 %v87
    %v162 = vpop.f32.mrb[0].mxu0
    %v163 = vadd.f32 %v78, %v162
    %v164 = vpop.f32.mrb[0].mxu0
    %v165 = vadd.f32 %v82, %v164
    %166 = vdwg.mxu0
    %v167 = vmax.f32 %v163, 0.0
    %v168 = vmax.f32 %v165, 0.0
    %v169 = vld [vmem:[#allocation7] sm:$0xff]
    %v170 = vld [vmem:[#allocation7 + $0x8] sm:$0xff]
    %v171 = vld [vmem:[#allocation7 + $0x10] sm:$0xff]
    %v172 = vld [vmem:[#allocation7 + $0x18] sm:$0xff]
    %v173 = vld [vmem:[#allocation7 + $0x20] sm:$0xff]
    %v174 = vld [vmem:[#allocation7 + $0x28] sm:$0xff]
    %v175 = vld [vmem:[#allocation7 + $0x30] sm:$0xff]
    %v176 = vld [vmem:[#allocation7 + $0x38] sm:$0xff]
    %v177 = vld [vmem:[#allocation7 + $0x40] sm:$0xff]
    %v178 = vld [vmem:[#allocation7 + $0x48] sm:$0xff]
    %v179 = vld [vmem:[#allocation7 + $0x50] sm:$0xff]
    %v180 = vld [vmem:[#allocation7 + $0x58] sm:$0xff]
    %v181 = vld [vmem:[#allocation7 + $0x60] sm:$0xff]
    %v182 = vld [vmem:[#allocation7 + $0x68] sm:$0xff]
    %v183 = vld [vmem:[#allocation7 + $0x70] sm:$0xff]
    %v184 = vld [vmem:[#allocation7 + $0x78] sm:$0xff]
    %v185 = vld [vmem:[#allocation7 + $0x80] sm:$0xff]
    %v186 = vld [vmem:[#allocation7 + $0x88] sm:$0xff]
    %v187 = vld [vmem:[#allocation7 + $0x90] sm:$0xff]
    %v188 = vld [vmem:[#allocation7 + $0x98] sm:$0xff]
    %v189 = vld [vmem:[#allocation7 + $0xa0] sm:$0xff]
    %v190 = vld [vmem:[#allocation7 + $0xa8] sm:$0xff]
    %v191 = vld [vmem:[#allocation7 + $0xb0] sm:$0xff]
    %v192 = vld [vmem:[#allocation7 + $0xb8] sm:$0xff]
    %v193 = vld [vmem:[#allocation7 + $0xc0] sm:$0xff]
    %v194 = vld [vmem:[#allocation7 + $0xc8] sm:$0xff]
    %v195 = vld [vmem:[#allocation7 + $0xd0] sm:$0xff]
    %v196 = vld [vmem:[#allocation7 + $0xd8] sm:$0xff]
    %v197 = vld [vmem:[#allocation7 + $0xe0] sm:$0xff]
    %v198 = vld [vmem:[#allocation7 + $0xe8] sm:$0xff]
    %v199 = vld [vmem:[#allocation7 + $0xf0] sm:$0xff]
    %v200 = vld [vmem:[#allocation7 + $0xf8] sm:$0xff]
    %v201 = vld [vmem:[#allocation7 + $0x100] sm:$0xff]
    %v202 = vld [vmem:[#allocation7 + $0x108] sm:$0xff]
    %v203 = vld [vmem:[#allocation7 + $0x110] sm:$0xff]
    %v204 = vld [vmem:[#allocation7 + $0x118] sm:$0xff]
    %v205 = vld [vmem:[#allocation7 + $0x120] sm:$0xff]
    %v206 = vld [vmem:[#allocation7 + $0x128] sm:$0xff]
    %v207 = vld [vmem:[#allocation7 + $0x130] sm:$0xff]
    %v208 = vld [vmem:[#allocation7 + $0x138] sm:$0xff]
    %v209 = vld [vmem:[#allocation7 + $0x140] sm:$0xff]
    %v210 = vld [vmem:[#allocation7 + $0x148] sm:$0xff]
    %v211 = vld [vmem:[#allocation7 + $0x150] sm:$0xff]
    %v212 = vld [vmem:[#allocation7 + $0x158] sm:$0xff]
    %v213 = vld [vmem:[#allocation7 + $0x160] sm:$0xff]
    %v214 = vld [vmem:[#allocation7 + $0x168] sm:$0xff]
    %v215 = vld [vmem:[#allocation7 + $0x170] sm:$0xff]
    %v216 = vld [vmem:[#allocation7 + $0x178] sm:$0xff]
    %v217 = vld [vmem:[#allocation7 + $0x180] sm:$0xff]
    %v218 = vld [vmem:[#allocation7 + $0x188] sm:$0xff]
    %v219 = vld [vmem:[#allocation7 + $0x190] sm:$0xff]
    %v220 = vld [vmem:[#allocation7 + $0x198] sm:$0xff]
    %v221 = vld [vmem:[#allocation7 + $0x1a0] sm:$0xff]
    %v222 = vld [vmem:[#allocation7 + $0x1a8] sm:$0xff]
    %v223 = vld [vmem:[#allocation7 + $0x1b0] sm:$0xff]
    %v224 = vld [vmem:[#allocation7 + $0x1b8] sm:$0xff]
    %v225 = vld [vmem:[#allocation7 + $0x1c0] sm:$0xff]
    %v226 = vld [vmem:[#allocation7 + $0x1c8] sm:$0xff]
    %v227 = vld [vmem:[#allocation7 + $0x1d0] sm:$0xff]
    %v228 = vld [vmem:[#allocation7 + $0x1d8] sm:$0xff]
    %v229 = vld [vmem:[#allocation7 + $0x1e0] sm:$0xff]
    %v230 = vld [vmem:[#allocation7 + $0x1e8] sm:$0xff]
    %v231 = vld [vmem:[#allocation7 + $0x1f0] sm:$0xff]
    %v232 = vld [vmem:[#allocation7 + $0x1f8] sm:$0xff]
    %v233 = vld [vmem:[%s4] sm:$0x3]
    %v235 = vlaneseq
    %v236 = vshrl.u32 %v235, 7
    %v237 = vsub.s32 0, %v236
    %v238 = vrot.slane %v233, %v237
    %v239 = vlaneseq
    %v240 = vshrl.u32 %v239, 7
    %v241 = vsub.s32 1, %v240
    %v242 = vrot.slane %v233, %v241
    %245 = vmatprep.subr.mxu0 %v170
    %246 = vmatpush1.msra.mxu0 %v169
    %247 = vmatprep.subr.mxu0 %v172
    %248 = vmatpush1.msra.mxu0 %v171
    %249 = vmatprep.subr.mxu0 %v174
    %250 = vmatpush1.msra.mxu0 %v173
    %251 = vmatprep.subr.mxu0 %v176
    %252 = vmatpush1.msra.mxu0 %v175
    %253 = vmatprep.subr.mxu0 %v178
    %254 = vmatpush1.msra.mxu0 %v177
    %255 = vmatprep.subr.mxu0 %v180
    %256 = vmatpush1.msra.mxu0 %v179
    %257 = vmatprep.subr.mxu0 %v182
    %258 = vmatpush1.msra.mxu0 %v181
    %259 = vmatprep.subr.mxu0 %v184
    %260 = vmatpush1.msra.mxu0 %v183
    %261 = vmatprep.subr.mxu0 %v186
    %262 = vmatpush1.msra.mxu0 %v185
    %263 = vmatprep.subr.mxu0 %v188
    %264 = vmatpush1.msra.mxu0 %v187
    %265 = vmatprep.subr.mxu0 %v190
    %266 = vmatpush1.msra.mxu0 %v189
    %267 = vmatprep.subr.mxu0 %v192
    %268 = vmatpush1.msra.mxu0 %v191
    %269 = vmatprep.subr.mxu0 %v194
    %270 = vmatpush1.msra.mxu0 %v193
    %271 = vmatprep.subr.mxu0 %v196
    %272 = vmatpush1.msra.mxu0 %v195
    %273 = vmatprep.subr.mxu0 %v198
    %274 = vmatpush1.msra.mxu0 %v197
    %275 = vmatprep.subr.mxu0 %v200
    %276 = vmatpush1.msra.mxu0 %v199
    %277 = vmatprep.subr.mxu0 %v202
    %278 = vmatpush1.msra.mxu0 %v201
    %279 = vmatprep.subr.mxu0 %v204
    %280 = vmatpush1.msra.mxu0 %v203
    %281 = vmatprep.subr.mxu0 %v206
    %282 = vmatpush1.msra.mxu0 %v205
    %283 = vmatprep.subr.mxu0 %v208
    %284 = vmatpush1.msra.mxu0 %v207
    %285 = vmatprep.subr.mxu0 %v210
    %286 = vmatpush1.msra.mxu0 %v209
    %287 = vmatprep.subr.mxu0 %v212
    %288 = vmatpush1.msra.mxu0 %v211
    %289 = vmatprep.subr.mxu0 %v214
    %290 = vmatpush1.msra.mxu0 %v213
    %291 = vmatprep.subr.mxu0 %v216
    %292 = vmatpush1.msra.mxu0 %v215
    %293 = vmatprep.subr.mxu0 %v218
    %294 = vmatpush1.msra.mxu0 %v217
    %295 = vmatprep.subr.mxu0 %v220
    %296 = vmatpush1.msra.mxu0 %v219
    %297 = vmatprep.subr.mxu0 %v222
    %298 = vmatpush1.msra.mxu0 %v221
    %299 = vmatprep.subr.mxu0 %v224
    %300 = vmatpush1.msra.mxu0 %v223
    %301 = vmatprep.subr.mxu0 %v226
    %302 = vmatpush1.msra.mxu0 %v225
    %303 = vmatprep.subr.mxu0 %v228
    %304 = vmatpush1.msra.mxu0 %v227
    %305 = vmatprep.subr.mxu0 %v230
    %306 = vmatpush1.msra.mxu0 %v229
    %307 = vmatprep.subr.mxu0 %v232
    %308 = vmatpush1.msra.mxu0 %v231
    %309 = vmatprep.mubr.f32.mxu0 %v168
    %310 = vmatmul.mubr.f32.gmra.mrb[0].mxu0 %v167
    %v311 = vpop.f32.mrb[0].mxu0
    %v312 = vadd.f32 %v238, %v311
    %v313 = vpop.f32.mrb[0].mxu0
    %v314 = vadd.f32 %v242, %v313
    %315 = vdwg.mxu0
    %v316 = vmax.f32 %v312, 0.0
    %v317 = vmax.f32 %v314, 0.0
    %v318 = vld [vmem:[%s5] sm:$0x3]
    %v320 = vlaneseq
    %v321 = vshrl.u32 %v320, 7
    %v322 = vsub.s32 0, %v321
    %v323 = vrot.slane %v318, %v322
    %v324 = vlaneseq
    %v325 = vshrl.u32 %v324, 7
    %v326 = vsub.s32 1, %v325
    %v327 = vrot.slane %v318, %v326
    %v330 = vmul.f32 %v316, %v323
    %v331 = vmul.f32 %v317, %v327
    %v332 = vadd.f32 %v330, %v331
    %333 = vadd.xlane.f32.xlu0 %v332
    %v334 = vpop.xlane.xlu0 %333
    %s335 = sld [smem:[#allocation2]]
    %v336 = vstv %s335
    %v337 = vadd.f32 %v334, %v336
    %vm338 = vcmask 7168
    %339 = vst.msk [vmem:[%s7] sm:$0xff] %vm338, %v337
    // Predicated region
    $region42: #{tpu_custom_call.1} parent=1 // pred_check
      _
    $region43: #{tpu_custom_call.1} parent=1 // pred_check_branch
      %341 = sbr.rel (0) target = $region45
    $region44: #{tpu_custom_call.1} parent=1 // pred_region
      _
    $region45: #{tpu_custom_call.1} parent=1 // pred_fallthru
      _
    // Predicated region
    $region46: #{tpu_custom_call.1} parent=1 // pred_check
      _
    $region47: #{tpu_custom_call.1} parent=1 // pred_check_branch
      %343 = sbr.rel (0) target = $region49
    $region48: #{tpu_custom_call.1} parent=1 // pred_region
      _
    $region49: #{tpu_custom_call.1} parent=1 // pred_fallthru
      _
    %344 = vsyncpa [#allocation4], 1
    %345 = vsyncpa [#allocation6], 1

</llo_original>
